<compile_context>
chip_gen: v5e
topology: v5e:2x2
jax: 0.10.0
libtpu: 0.0.40
codegen_flags: <defaults>
</compile_context>

<pallas_src>
import math

import jax
import jax.numpy as jnp
from jax.experimental import pallas as pl
from jax.experimental.pallas import tpu as pltpu


# ----------------------------------------------------------------------------
# Kernel
# ----------------------------------------------------------------------------
def _make_sft_kernel(split_second_layer):
    def kernel(l_ref, g_ref,
               w0_ref, b0_ref,          # fused first layer: (2C, C), (2C, 1)
               w1s_ref, b1s_ref,        # scale 2nd layer (bias has +1 folded in)
               w1h_ref, b1h_ref,        # shift 2nd layer
               o_ref):
        g = g_ref[...]                  # (C, T) — T on the lane axis
        l = l_ref[...]                  # (C, T)

        # Fused first layer for both branches: (2C, C) @ (C, T) -> (2C, T)
        h = jnp.dot(w0_ref[...], g, preferred_element_type=jnp.float32) + b0_ref[...]
        h = jnp.maximum(h, 0.0)

        if split_second_layer:
            # C % 8 == 0: 8-aligned sublane slices of h are free views;
            # weights are (C, C) -> half the MXU work / weight VMEM.
            C = w1s_ref.shape[0]
            scale_p1 = jnp.dot(w1s_ref[...], h[:C],
                               preferred_element_type=jnp.float32) + b1s_ref[...]
            shift = jnp.dot(w1h_ref[...], h[C:],
                            preferred_element_type=jnp.float32) + b1h_ref[...]
        else:
            # Zero-padded (C, 2C) weights pick out each branch's hidden rows.
            scale_p1 = jnp.dot(w1s_ref[...], h,
                               preferred_element_type=jnp.float32) + b1s_ref[...]
            shift = jnp.dot(w1h_ref[...], h,
                            preferred_element_type=jnp.float32) + b1h_ref[...]

        # out = local * (scale + 1) + shift   (the +1 is already inside b1s)
        o_ref[...] = (l * scale_p1 + shift).astype(o_ref.dtype)

    return kernel


# ----------------------------------------------------------------------------
# Wrapper: NCHW in, NCHW out (no pad, no slice — only free reshapes)
# ----------------------------------------------------------------------------
def _vmem_capacity_bytes():
    try:
        return int(pltpu.get_tpu_info().vmem_capacity_bytes)
    except Exception:
        return 64 * 1024 * 1024  # conservative fallback (v7x per-core VMEM)


def sft_layer_nchw(local_nchw, global_nchw, fused_params):
    N, C, H, W = local_nchw.shape
    HW = H * W
    dtype = local_nchw.dtype
    itemsize = jnp.dtype(dtype).itemsize

    split_second = fused_params["w1s"].shape[1] == C

    # --- generation-aware VMEM budgeting -----------------------------------
    vmem_cap = _vmem_capacity_bytes()
    # 128 MiB (v5e/v6e) -> 96 MiB limit; 64 MiB (v7x) -> 48 MiB limit.
    vmem_limit = min((vmem_cap * 3) // 4, 100 * 1024 * 1024)
    # Leave headroom for Mosaic internal scratch.
    data_budget = max(vmem_limit - 8 * 1024 * 1024, 16 * 1024 * 1024)

    # Parameter blocks are grid-invariant but double-buffered by the default
    # pipeline: count both buffers.
    weight_bytes = 2 * sum(int(v.size) * jnp.dtype(v.dtype).itemsize
                           for v in fused_params.values())

    # Per spatial lane: l/g/out streamed blocks (double-buffered) + the f32
    # intermediates h (2C rows), scale_p1 (C) and shift (C).
    lane_bytes = 6 * C * itemsize + 16 * C
    avail = max(data_budget - weight_bytes, lane_bytes * 128)
    t = max(128, ((avail // lane_bytes) // 128) * 128)
    t = min(t, max(128, pl.cdiv(HW, 128) * 128))   # never larger than needed

    tiles = pl.cdiv(HW, t)
    # Ensure >=2 total grid steps so v7x's second TensorCore gets work; the
    # extra grid step is ~free (~0.35 us) on single-core chips.
    if N * tiles < 2 and t >= 256:
        t = max(128, ((t // 2) // 128) * 128)
        tiles = pl.cdiv(HW, t)

    l = local_nchw.reshape(N, C, HW)
    g = global_nchw.reshape(N, C, HW)

    tok_spec = pl.BlockSpec((None, C, t), lambda n, j: (n, 0, j))

    def full_spec(arr):
        return pl.BlockSpec(arr.shape, lambda n, j: (0, 0))

    kernel = _make_sft_kernel(split_second)

    out = pl.pallas_call(
        kernel,
        out_shape=jax.ShapeDtypeStruct((N, C, HW), dtype),
        grid_spec=pltpu.PrefetchScalarGridSpec(
            num_scalar_prefetch=0,
            grid=(N, tiles),
            in_specs=[tok_spec, tok_spec,
                      full_spec(fused_params["w0"]), full_spec(fused_params["b0"]),
                      full_spec(fused_params["w1s"]), full_spec(fused_params["b1s"]),
                      full_spec(fused_params["w1h"]), full_spec(fused_params["b1h"])],
            out_specs=tok_spec,
        ),
        compiler_params=pltpu.CompilerParams(
            dimension_semantics=("parallel", "parallel"),
            vmem_limit_bytes=int(vmem_limit)),
    )(l, g,
      fused_params["w0"], fused_params["b0"],
      fused_params["w1s"], fused_params["b1s"],
      fused_params["w1h"], fused_params["b1h"])

    return out.reshape(N, C, H, W)


# ----------------------------------------------------------------------------
# Parameters
# ----------------------------------------------------------------------------
def init_raw_params(key, head_channels):
    """Torch-style 1x1 conv params: weight (C_out, C_in), bias (C_out,)."""
    C = head_channels
    ks = jax.random.split(key, 8)
    bound = 1.0 / math.sqrt(C)

    def w(k):
        return jax.random.uniform(k, (C, C), jnp.float32, -bound, bound)

    def b(k):
        return jax.random.uniform(k, (C,), jnp.float32, -bound, bound)

    return {
        "scale_w0": w(ks[0]), "scale_b0": b(ks[1]),
        "scale_w1": w(ks[2]), "scale_b1": b(ks[3]),
        "shift_w0": w(ks[4]), "shift_b0": b(ks[5]),
        "shift_w1": w(ks[6]), "shift_b1": b(ks[7]),
    }


def prepare_fused_params(raw):
    """Fuse branch weights for the kernel and fold the '+1' into the scale bias."""
    C = raw["scale_w0"].shape[0]
    params = {
        "w0": jnp.concatenate([raw["scale_w0"], raw["shift_w0"]], axis=0),            # (2C, C)
        "b0": jnp.concatenate([raw["scale_b0"], raw["shift_b0"]], axis=0)[:, None],   # (2C, 1)
        "b1s": (raw["scale_b1"] + 1.0)[:, None],                                      # (C, 1)
        "b1h": raw["shift_b1"][:, None],                                              # (C, 1)
    }
    if C % 8 == 0:
        # Second layer acts on 8-aligned sublane slices of h -> keep (C, C).
        params["w1s"] = raw["scale_w1"]
        params["w1h"] = raw["shift_w1"]
    else:
        zeros = jnp.zeros((C, C), raw["scale_w1"].dtype)
        params["w1s"] = jnp.concatenate([raw["scale_w1"], zeros], axis=1)              # (C, 2C)
        params["w1h"] = jnp.concatenate([zeros, raw["shift_w1"]], axis=1)              # (C, 2C)
    return params


# ----------------------------------------------------------------------------
# Pure-JAX reference mirroring the PyTorch forward
# ----------------------------------------------------------------------------
def _reference(local_nchw, global_nchw, raw):
    def conv1x1(x, w, b):  # w: (C_out, C_in), b: (C_out,)
        return jnp.einsum("oc,nchw->nohw", w, x) + b[None, :, None, None]

    g = global_nchw
    scale = conv1x1(jax.nn.relu(conv1x1(g, raw["scale_w0"], raw["scale_b0"])),
                    raw["scale_w1"], raw["scale_b1"])
    shift = conv1x1(jax.nn.relu(conv1x1(g, raw["shift_w0"], raw["shift_b0"])),
                    raw["shift_w1"], raw["shift_b1"])
    return local_nchw * (scale + 1.0) + shift


# ----------------------------------------------------------------------------
# Demo / self-test
# ----------------------------------------------------------------------------
if __name__ == "__main__":
    key = jax.random.PRNGKey(0)
    k_params, k_local, k_global = jax.random.split(key, 3)

    N, C, H, W = 2, 4, 16, 16   # batch=2, head_channels=4, 16x16 spatial
    raw_params = init_raw_params(k_params, C)
    fused_params = prepare_fused_params(raw_params)

    local_features = jax.random.normal(k_local, (N, C, H, W), jnp.float32)
    global_features = jax.random.normal(k_global, (N, C, H, W), jnp.float32)

    out = sft_layer_nchw(local_features, global_features, fused_params)
    out = jax.block_until_ready(out)

    ref = _reference(local_features, global_features, raw_params)
    assert out.shape == (N, C, H, W)
    assert jnp.allclose(out, ref, atol=1e-4, rtol=1e-4), "mismatch vs reference"

    print("KERNEL_OK")
</pallas_src>

<mosaic_0001>
module attributes {stable_mosaic.version = 11 : i64} {
  func.func @kernel(%arg0: i32, %arg1: i32, %arg2: memref<1x4x256xf32, #tpu.memory_space<vmem>>, %arg3: memref<1x4x256xf32, #tpu.memory_space<vmem>>, %arg4: memref<8x4xf32, #tpu.memory_space<vmem>>, %arg5: memref<8x1xf32, #tpu.memory_space<vmem>>, %arg6: memref<4x8xf32, #tpu.memory_space<vmem>>, %arg7: memref<4x1xf32, #tpu.memory_space<vmem>>, %arg8: memref<4x8xf32, #tpu.memory_space<vmem>>, %arg9: memref<4x1xf32, #tpu.memory_space<vmem>>, %arg10: memref<1x4x256xf32, #tpu.memory_space<vmem>>) attributes {dimension_semantics = [#tpu.dimension_semantics<parallel>, #tpu.dimension_semantics<parallel>], iteration_bounds = array<i64: 2, 1>, scalar_prefetch = 0 : i64, scratch_operands = 0 : i64, tpu.core_type = #tpu.core_type<tc>, window_params = [{transform_indices = @transform_0, window_bounds = array<i64: 1, 4, 256>}, {transform_indices = @transform_1, window_bounds = array<i64: 1, 4, 256>}, {pipeline_mode = #tpu.pipeline_mode<synchronous>, transform_indices = @transform_2, window_bounds = array<i64: 8, 4>}, {pipeline_mode = #tpu.pipeline_mode<synchronous>, transform_indices = @transform_3, window_bounds = array<i64: 8, 1>}, {pipeline_mode = #tpu.pipeline_mode<synchronous>, transform_indices = @transform_4, window_bounds = array<i64: 4, 8>}, {pipeline_mode = #tpu.pipeline_mode<synchronous>, transform_indices = @transform_5, window_bounds = array<i64: 4, 1>}, {pipeline_mode = #tpu.pipeline_mode<synchronous>, transform_indices = @transform_6, window_bounds = array<i64: 4, 8>}, {pipeline_mode = #tpu.pipeline_mode<synchronous>, transform_indices = @transform_7, window_bounds = array<i64: 4, 1>}, {transform_indices = @transform_8, window_bounds = array<i64: 1, 4, 256>}]} {
    %c0 = arith.constant 0 : index
    %c0_0 = arith.constant 0 : index
    %c0_1 = arith.constant 0 : index
    %0 = vector.load %arg3[%c0, %c0_0, %c0_1] : memref<1x4x256xf32, #tpu.memory_space<vmem>>, vector<1x4x256xf32>
    %1 = vector.shape_cast %0 : vector<1x4x256xf32> to vector<4x256xf32>
    %c0_2 = arith.constant 0 : index
    %c0_3 = arith.constant 0 : index
    %c0_4 = arith.constant 0 : index
    %2 = vector.load %arg2[%c0_2, %c0_3, %c0_4] : memref<1x4x256xf32, #tpu.memory_space<vmem>>, vector<1x4x256xf32>
    %3 = vector.shape_cast %2 : vector<1x4x256xf32> to vector<4x256xf32>
    %c0_5 = arith.constant 0 : index
    %c0_6 = arith.constant 0 : index
    %4 = vector.load %arg4[%c0_5, %c0_6] : memref<8x4xf32, #tpu.memory_space<vmem>>, vector<8x4xf32>
    %cst = arith.constant dense<0.000000e+00> : vector<8x256xf32>
    %5 = tpu.matmul %4, %1, %cst {dimension_numbers = #tpu.dot_dimension_numbers<[1], [0], [0], [1], [0, 0, 1, 1], [], []>} : vector<8x4xf32>, vector<4x256xf32>, vector<8x256xf32> -> vector<8x256xf32>
    %c0_7 = arith.constant 0 : index
    %c0_8 = arith.constant 0 : index
    %6 = vector.load %arg5[%c0_7, %c0_8] : memref<8x1xf32, #tpu.memory_space<vmem>>, vector<8x1xf32>
    %7 = vector.broadcast %6 : vector<8x1xf32> to vector<8x256xf32>
    %8 = arith.addf %5, %7 : vector<8x256xf32>
    %cst_9 = arith.constant 0.000000e+00 : f32
    %9 = vector.broadcast %cst_9 : f32 to vector<8x256xf32>
    %10 = arith.maximumf %8, %9 : vector<8x256xf32>
    %c0_10 = arith.constant 0 : index
    %c0_11 = arith.constant 0 : index
    %11 = vector.load %arg6[%c0_10, %c0_11] : memref<4x8xf32, #tpu.memory_space<vmem>>, vector<4x8xf32>
    %cst_12 = arith.constant dense<0.000000e+00> : vector<4x256xf32>
    %12 = tpu.matmul %11, %10, %cst_12 {dimension_numbers = #tpu.dot_dimension_numbers<[1], [0], [0], [1], [0, 0, 1, 1], [], []>} : vector<4x8xf32>, vector<8x256xf32>, vector<4x256xf32> -> vector<4x256xf32>
    %c0_13 = arith.constant 0 : index
    %c0_14 = arith.constant 0 : index
    %13 = vector.load %arg7[%c0_13, %c0_14] : memref<4x1xf32, #tpu.memory_space<vmem>>, vector<4x1xf32>
    %14 = vector.broadcast %13 : vector<4x1xf32> to vector<4x256xf32>
    %15 = arith.addf %12, %14 : vector<4x256xf32>
    %c0_15 = arith.constant 0 : index
    %c0_16 = arith.constant 0 : index
    %16 = vector.load %arg8[%c0_15, %c0_16] : memref<4x8xf32, #tpu.memory_space<vmem>>, vector<4x8xf32>
    %cst_17 = arith.constant dense<0.000000e+00> : vector<4x256xf32>
    %17 = tpu.matmul %16, %10, %cst_17 {dimension_numbers = #tpu.dot_dimension_numbers<[1], [0], [0], [1], [0, 0, 1, 1], [], []>} : vector<4x8xf32>, vector<8x256xf32>, vector<4x256xf32> -> vector<4x256xf32>
    %c0_18 = arith.constant 0 : index
    %c0_19 = arith.constant 0 : index
    %18 = vector.load %arg9[%c0_18, %c0_19] : memref<4x1xf32, #tpu.memory_space<vmem>>, vector<4x1xf32>
    %19 = vector.broadcast %18 : vector<4x1xf32> to vector<4x256xf32>
    %20 = arith.addf %17, %19 : vector<4x256xf32>
    %21 = arith.mulf %3, %15 : vector<4x256xf32>
    %22 = arith.addf %21, %20 : vector<4x256xf32>
    %c0_20 = arith.constant 0 : index
    %c0_21 = arith.constant 0 : index
    %c0_22 = arith.constant 0 : index
    %23 = vector.load %arg10[%c0_20, %c0_21, %c0_22] : memref<1x4x256xf32, #tpu.memory_space<vmem>>, vector<1x4x256xf32>
    %24 = vector.shape_cast %23 : vector<1x4x256xf32> to vector<4x256xf32>
    %25 = vector.shape_cast %22 : vector<4x256xf32> to vector<1x4x256xf32>
    tpu.vector_store %arg10[%c0_20, %c0_21, %c0_22], %25 {strides = array<i32>} : memref<1x4x256xf32, #tpu.memory_space<vmem>>, vector<1x4x256xf32>,
    return
  }
  func.func @transform_0(%arg0: i32, %arg1: i32) -> (i32, i32, i32) {
    %c0_i32 = arith.constant 0 : i32
    %c0_i32_0 = arith.constant 0 : i32
    return %arg0, %c0_i32, %arg1 : i32, i32, i32
  }
  func.func @transform_1(%arg0: i32, %arg1: i32) -> (i32, i32, i32) {
    %c0_i32 = arith.constant 0 : i32
    %c0_i32_0 = arith.constant 0 : i32
    return %arg0, %c0_i32, %arg1 : i32, i32, i32
  }
  func.func @transform_2(%arg0: i32, %arg1: i32) -> (i32, i32) {
    %c0_i32 = arith.constant 0 : i32
    %c0_i32_0 = arith.constant 0 : i32
    %c0_i32_1 = arith.constant 0 : i32
    return %c0_i32, %c0_i32_0 : i32, i32
  }
  func.func @transform_3(%arg0: i32, %arg1: i32) -> (i32, i32) {
    %c0_i32 = arith.constant 0 : i32
    %c0_i32_0 = arith.constant 0 : i32
    %c0_i32_1 = arith.constant 0 : i32
    return %c0_i32, %c0_i32_0 : i32, i32
  }
  func.func @transform_4(%arg0: i32, %arg1: i32) -> (i32, i32) {
    %c0_i32 = arith.constant 0 : i32
    %c0_i32_0 = arith.constant 0 : i32
    %c0_i32_1 = arith.constant 0 : i32
    return %c0_i32, %c0_i32_0 : i32, i32
  }
  func.func @transform_5(%arg0: i32, %arg1: i32) -> (i32, i32) {
    %c0_i32 = arith.constant 0 : i32
    %c0_i32_0 = arith.constant 0 : i32
    %c0_i32_1 = arith.constant 0 : i32
    return %c0_i32, %c0_i32_0 : i32, i32
  }
  func.func @transform_6(%arg0: i32, %arg1: i32) -> (i32, i32) {
    %c0_i32 = arith.constant 0 : i32
    %c0_i32_0 = arith.constant 0 : i32
    %c0_i32_1 = arith.constant 0 : i32
    return %c0_i32, %c0_i32_0 : i32, i32
  }
  func.func @transform_7(%arg0: i32, %arg1: i32) -> (i32, i32) {
    %c0_i32 = arith.constant 0 : i32
    %c0_i32_0 = arith.constant 0 : i32
    %c0_i32_1 = arith.constant 0 : i32
    return %c0_i32, %c0_i32_0 : i32, i32
  }
  func.func @transform_8(%arg0: i32, %arg1: i32) -> (i32, i32, i32) {
    %c0_i32 = arith.constant 0 : i32
    %c0_i32_0 = arith.constant 0 : i32
    return %arg0, %c0_i32, %arg1 : i32, i32, i32
  }
}

</mosaic_0001>

<llo_original>
// kernel: tpu_custom_call.1
$region0: #{tpu_custom_call.1}
  #allocation0 [shape = 'u32[]', space=smem, size = 0x4, offset = 0x4, fixed_abs, tag = 'smem constant byte address 0x4 - core index']
  #allocation1 [shape = 'u32[72,128]{1,0:T(1,128)}', space=vmem, size = 0x9000, scoped, tag = 'internal scratch']
  %s0 = inlined_call_operand.vmem [shape: f32[2,4,256], index: 0, kind: input, shape index: {}]
  %s1 = inlined_call_operand.hbm [shape: f32[2,4,256], index: 1, kind: input, shape index: {}]
  %s2 = inlined_call_operand.vmem [shape: f32[8,4], index: 2, kind: input, shape index: {}]
  %s3 = inlined_call_operand.vmem [shape: f32[8,1], index: 3, kind: input, shape index: {}]
  %s4 = inlined_call_operand.vmem [shape: f32[4,8], index: 4, kind: input, shape index: {}]
  %s5 = inlined_call_operand.vmem [shape: f32[4,1], index: 5, kind: input, shape index: {}]
  %s6 = inlined_call_operand.vmem [shape: f32[4,8], index: 6, kind: input, shape index: {}]
  %s7 = inlined_call_operand.vmem [shape: f32[4,1], index: 7, kind: input, shape index: {}]
  %s8 = inlined_call_operand.hbm [shape: f32[2,4,256], index: 8, kind: output, shape index: {}]
  %s9 = sld [smem:[#allocation0]]
  $region69: #{tpu_custom_call.1} parent=0
    _
  %s11 = ssub.s32 1, %s9
  %s12 = scalar_select 0, %s11, %s9
  $region1: #{tpu_custom_call.1} parent=0
    #allocation2 [shape = 'u8[8192]{0}', space=vmem, size = 0x2000, scoped, tag = 'input window, operand 1']
    #allocation3 [shape = 's32[2]{0}', space=sflag, size = 0x8, scoped, tag = 'scoped memory for tpu_custom_call.1']
    #allocation4 [shape = 's32[2]{0}', space=sflag, size = 0x8, scoped, tag = 'scoped memory for tpu_custom_call.1']
    #allocation5 [shape = 'u8[8192]{0}', space=vmem, size = 0x2000, scoped, tag = 'output window, operand 0']
    %13 = vsyncpa [#allocation3], 0
    %s14 = scalar_lea.sflag [#allocation3], 1
    %15 = vsyncpa %s14, 0
    %16 = vsyncpa [#allocation4], 0
    %s17 = scalar_lea.sflag [#allocation4], 1
    %18 = vsyncpa %s17, 0
    loop: start=0, step=1, limit=4
    $region2: #{tpu_custom_call.1} parent=1 // loop_pre_header
      _
    $region3: #{tpu_custom_call.1} parent=1 // loop_header
      %s20 = sphi 0, %s24
      %p21 = scmp.ge.s32.totalorder %s20, 4
      %s27 = sphi 0, %s39
      %s28 = sphi 0, %s35
      %s29 = sphi 0, %s27
      %s30 = sphi 0, %s28
      %s31 = sphi 0, %s29
      %s32 = sphi 0, %s30
      %s44 = sphi 0, %s46
      %s47 = sphi 0, %s44
      %s48 = sphi 0, %s47
      %s64 = sphi 0, %s48
      %s72 = sphi 0, %s74
      %s75 = sphi 0, %s72
      %s76 = sphi 0, %s75
      %s92 = sphi 0, %s76
      %s96 = sphi 0, %s96
      %s98 = sphi 0, %s96
      %s99 = sphi 0, %s98
      %s113 = sphi 0, %s99
      %s117 = sphi 0, %s117
      %s119 = sphi 0, %s117
      %s120 = sphi 0, %s119
      %s134 = sphi 0, %s120
      %s138 = sphi 0, %s138
      %s140 = sphi 0, %s138
      %s141 = sphi 0, %s140
      %s155 = sphi 0, %s141
      %s159 = sphi 0, %s159
      %s161 = sphi 0, %s159
      %s162 = sphi 0, %s161
      %s176 = sphi 0, %s162
      %s180 = sphi 0, %s180
      %s182 = sphi 0, %s180
      %s183 = sphi 0, %s182
      %s197 = sphi 0, %s183
      %s201 = sphi 0, %s201
      %s203 = sphi 0, %s201
      %s204 = sphi 0, %s203
      %s218 = sphi 0, %s204
      %s226 = sphi 0, %s228
      %s229 = sphi 0, %s226
      %s230 = sphi 0, %s229
      %s246 = sphi 0, %s230
    $region4: #{tpu_custom_call.1} parent=1 // loop_header_branch
      %23 = sbr.rel (%p21) target = $region8
    $region5: #{tpu_custom_call.1} parent=1 // loop_body
      %s25 = ssub.s32 %s20, 1
      %s26 = ssub.s32 %s20, 2
      %s33 = sadd.s32 1, %s28
      %p34 = scmp.ge.s32.totalorder %s33, 1
      %s35 = scalar_select %p34, 0, %s33
      %s36 = sadd.s32 1, %s27
      %s37 = scalar_select %p34, %s36, %s27
      %p38 = scmp.ge.s32.totalorder %s37, 2
      %s39 = scalar_select %p38, 0, %s37
      %s40 = ssub.s32 %s27, %s39
      %s41 = ssub.s32 %s28, %s35
      %s42 = sor.u32 %s40, %s41
      %p43 = scmp.eq.s32.totalorder %s42, 0
      %s45 = sadd.s32 %s44, 1
      %s46 = scalar_select %p43, %s44, %s45
      %p49 = pneg %p43
      %p50 = scmp.eq.s32.totalorder %s20, 1
      %p51 = por %p49, %p50
      %p52 = scmp.ne.s32.totalorder %s44, %s47
      %p53 = scmp.eq.s32.totalorder %s20, 0
      %p54 = por %p52, %p53
      %p55 = scmp.ne.s32.totalorder %s44, %s47
      %p56 = scmp.eq.s32.totalorder %s25, 1
      %p57 = por %p55, %p56
      %p58 = scmp.ne.s32.totalorder %s47, %s48
      %p59 = scmp.eq.s32.totalorder %s25, 0
      %p60 = por %p58, %p59
      %p61 = scmp.ne.s32.totalorder %s47, %s48
      %p62 = scmp.eq.s32.totalorder %s26, 1
      %p63 = por %p61, %p62
      %p65 = scmp.ne.s32.totalorder %s48, %s64
      %p66 = scmp.eq.s32.totalorder %s26, 0
      %p67 = por %p65, %p66
      %s68 = ssub.s32 %s27, %s39
      %s69 = ssub.s32 %s28, %s35
      %s70 = sor.u32 %s68, %s69
      %p71 = scmp.eq.s32.totalorder %s70, 0
      %s73 = sadd.s32 %s72, 1
      %s74 = scalar_select %p71, %s72, %s73
      %p77 = pneg %p71
      %p78 = scmp.eq.s32.totalorder %s20, 1
      %p79 = por %p77, %p78
      %p80 = scmp.ne.s32.totalorder %s72, %s75
      %p81 = scmp.eq.s32.totalorder %s20, 0
      %p82 = por %p80, %p81
      %p83 = scmp.ne.s32.totalorder %s72, %s75
      %p84 = scmp.eq.s32.totalorder %s25, 1
      %p85 = por %p83, %p84
      %p86 = scmp.ne.s32.totalorder %s75, %s76
      %p87 = scmp.eq.s32.totalorder %s25, 0
      %p88 = por %p86, %p87
      %p89 = scmp.ne.s32.totalorder %s75, %s76
      %p90 = scmp.eq.s32.totalorder %s26, 1
      %p91 = por %p89, %p90
      %p93 = scmp.ne.s32.totalorder %s76, %s92
      %p94 = scmp.eq.s32.totalorder %s26, 0
      %p95 = por %p93, %p94
      %s97 = sadd.s32 %s96, 1
      %p100 = scmp.eq.s32.totalorder %s20, 1
      %p101 = scmp.ne.s32.totalorder %s96, %s98
      %p102 = scmp.eq.s32.totalorder %s20, 0
      %p103 = por %p101, %p102
      %p104 = scmp.ne.s32.totalorder %s96, %s98
      %p105 = scmp.eq.s32.totalorder %s25, 1
      %p106 = por %p104, %p105
      %p107 = scmp.ne.s32.totalorder %s98, %s99
      %p108 = scmp.eq.s32.totalorder %s25, 0
      %p109 = por %p107, %p108
      %p110 = scmp.ne.s32.totalorder %s98, %s99
      %p111 = scmp.eq.s32.totalorder %s26, 1
      %p112 = por %p110, %p111
      %p114 = scmp.ne.s32.totalorder %s99, %s113
      %p115 = scmp.eq.s32.totalorder %s26, 0
      %p116 = por %p114, %p115
      %s118 = sadd.s32 %s117, 1
      %p121 = scmp.eq.s32.totalorder %s20, 1
      %p122 = scmp.ne.s32.totalorder %s117, %s119
      %p123 = scmp.eq.s32.totalorder %s20, 0
      %p124 = por %p122, %p123
      %p125 = scmp.ne.s32.totalorder %s117, %s119
      %p126 = scmp.eq.s32.totalorder %s25, 1
      %p127 = por %p125, %p126
      %p128 = scmp.ne.s32.totalorder %s119, %s120
      %p129 = scmp.eq.s32.totalorder %s25, 0
      %p130 = por %p128, %p129
      %p131 = scmp.ne.s32.totalorder %s119, %s120
      %p132 = scmp.eq.s32.totalorder %s26, 1
      %p133 = por %p131, %p132
      %p135 = scmp.ne.s32.totalorder %s120, %s134
      %p136 = scmp.eq.s32.totalorder %s26, 0
      %p137 = por %p135, %p136
      %s139 = sadd.s32 %s138, 1
      %p142 = scmp.eq.s32.totalorder %s20, 1
      %p143 = scmp.ne.s32.totalorder %s138, %s140
      %p144 = scmp.eq.s32.totalorder %s20, 0
      %p145 = por %p143, %p144
      %p146 = scmp.ne.s32.totalorder %s138, %s140
      %p147 = scmp.eq.s32.totalorder %s25, 1
      %p148 = por %p146, %p147
      %p149 = scmp.ne.s32.totalorder %s140, %s141
      %p150 = scmp.eq.s32.totalorder %s25, 0
      %p151 = por %p149, %p150
      %p152 = scmp.ne.s32.totalorder %s140, %s141
      %p153 = scmp.eq.s32.totalorder %s26, 1
      %p154 = por %p152, %p153
      %p156 = scmp.ne.s32.totalorder %s141, %s155
      %p157 = scmp.eq.s32.totalorder %s26, 0
      %p158 = por %p156, %p157
      %s160 = sadd.s32 %s159, 1
      %p163 = scmp.eq.s32.totalorder %s20, 1
      %p164 = scmp.ne.s32.totalorder %s159, %s161
      %p165 = scmp.eq.s32.totalorder %s20, 0
      %p166 = por %p164, %p165
      %p167 = scmp.ne.s32.totalorder %s159, %s161
      %p168 = scmp.eq.s32.totalorder %s25, 1
      %p169 = por %p167, %p168
      %p170 = scmp.ne.s32.totalorder %s161, %s162
      %p171 = scmp.eq.s32.totalorder %s25, 0
      %p172 = por %p170, %p171
      %p173 = scmp.ne.s32.totalorder %s161, %s162
      %p174 = scmp.eq.s32.totalorder %s26, 1
      %p175 = por %p173, %p174
      %p177 = scmp.ne.s32.totalorder %s162, %s176
      %p178 = scmp.eq.s32.totalorder %s26, 0
      %p179 = por %p177, %p178
      %s181 = sadd.s32 %s180, 1
      %p184 = scmp.eq.s32.totalorder %s20, 1
      %p185 = scmp.ne.s32.totalorder %s180, %s182
      %p186 = scmp.eq.s32.totalorder %s20, 0
      %p187 = por %p185, %p186
      %p188 = scmp.ne.s32.totalorder %s180, %s182
      %p189 = scmp.eq.s32.totalorder %s25, 1
      %p190 = por %p188, %p189
      %p191 = scmp.ne.s32.totalorder %s182, %s183
      %p192 = scmp.eq.s32.totalorder %s25, 0
      %p193 = por %p191, %p192
      %p194 = scmp.ne.s32.totalorder %s182, %s183
      %p195 = scmp.eq.s32.totalorder %s26, 1
      %p196 = por %p194, %p195
      %p198 = scmp.ne.s32.totalorder %s183, %s197
      %p199 = scmp.eq.s32.totalorder %s26, 0
      %p200 = por %p198, %p199
      %s202 = sadd.s32 %s201, 1
      %p205 = scmp.eq.s32.totalorder %s20, 1
      %p206 = scmp.ne.s32.totalorder %s201, %s203
      %p207 = scmp.eq.s32.totalorder %s20, 0
      %p208 = por %p206, %p207
      %p209 = scmp.ne.s32.totalorder %s201, %s203
      %p210 = scmp.eq.s32.totalorder %s25, 1
      %p211 = por %p209, %p210
      %p212 = scmp.ne.s32.totalorder %s203, %s204
      %p213 = scmp.eq.s32.totalorder %s25, 0
      %p214 = por %p212, %p213
      %p215 = scmp.ne.s32.totalorder %s203, %s204
      %p216 = scmp.eq.s32.totalorder %s26, 1
      %p217 = por %p215, %p216
      %p219 = scmp.ne.s32.totalorder %s204, %s218
      %p220 = scmp.eq.s32.totalorder %s26, 0
      %p221 = por %p219, %p220
      %s222 = ssub.s32 %s27, %s39
      %s223 = ssub.s32 %s28, %s35
      %s224 = sor.u32 %s222, %s223
      %p225 = scmp.eq.s32.totalorder %s224, 0
      %s227 = sadd.s32 %s226, 1
      %s228 = scalar_select %p225, %s226, %s227
      %p231 = pneg %p225
      %p232 = scmp.eq.s32.totalorder %s20, 1
      %p233 = por %p231, %p232
      %p234 = scmp.ne.s32.totalorder %s226, %s229
      %p235 = scmp.eq.s32.totalorder %s20, 0
      %p236 = por %p234, %p235
      %p237 = scmp.ne.s32.totalorder %s226, %s229
      %p238 = scmp.eq.s32.totalorder %s25, 1
      %p239 = por %p237, %p238
      %p240 = scmp.ne.s32.totalorder %s229, %s230
      %p241 = scmp.eq.s32.totalorder %s25, 0
      %p242 = por %p240, %p241
      %p243 = scmp.ne.s32.totalorder %s229, %s230
      %p244 = scmp.eq.s32.totalorder %s26, 1
      %p245 = por %p243, %p244
      %p247 = scmp.ne.s32.totalorder %s230, %s246
      %p248 = scmp.eq.s32.totalorder %s26, 0
      %p249 = por %p247, %p248
      %p250 = scmp.le.s32.totalorder 1, %s20
      %p251 = scmp.lt.s32.totalorder %s20, 3
      %p252 = pnand %p250, %p251
      %p253 = pneg %p252
      // Predicated region
      $region9: #{tpu_custom_call.1} parent=5 // pred_check
        _
      $region10: #{tpu_custom_call.1} parent=5 // pred_check_branch
        %255 = sbr.rel (%p252) target = $region12
      $region11: #{tpu_custom_call.1} parent=5 // pred_region
        %s256 = ssub.s32 %s20, 1
        // Predicated region
        $region13: #{tpu_custom_call.1} parent=11 // pred_check
          %p257 = pneg %p109
        $region14: #{tpu_custom_call.1} parent=11 // pred_check_branch
          %259 = sbr.rel (%p257) target = $region16
        $region15: #{tpu_custom_call.1} parent=11 // pred_region
          _
        $region16: #{tpu_custom_call.1} parent=11 // pred_fallthru
          _
        // Predicated region
        $region17: #{tpu_custom_call.1} parent=11 // pred_check
          %p260 = pneg %p130
        $region18: #{tpu_custom_call.1} parent=11 // pred_check_branch
          %262 = sbr.rel (%p260) target = $region20
        $region19: #{tpu_custom_call.1} parent=11 // pred_region
          _
        $region20: #{tpu_custom_call.1} parent=11 // pred_fallthru
          _
        // Predicated region
        $region21: #{tpu_custom_call.1} parent=11 // pred_check
          %p263 = pneg %p151
        $region22: #{tpu_custom_call.1} parent=11 // pred_check_branch
          %265 = sbr.rel (%p263) target = $region24
        $region23: #{tpu_custom_call.1} parent=11 // pred_region
          _
        $region24: #{tpu_custom_call.1} parent=11 // pred_fallthru
          _
        // Predicated region
        $region25: #{tpu_custom_call.1} parent=11 // pred_check
          %p266 = pneg %p172
        $region26: #{tpu_custom_call.1} parent=11 // pred_check_branch
          %268 = sbr.rel (%p266) target = $region28
        $region27: #{tpu_custom_call.1} parent=11 // pred_region
          _
        $region28: #{tpu_custom_call.1} parent=11 // pred_fallthru
          _
        // Predicated region
        $region29: #{tpu_custom_call.1} parent=11 // pred_check
          %p269 = pneg %p193
        $region30: #{tpu_custom_call.1} parent=11 // pred_check_branch
          %271 = sbr.rel (%p269) target = $region32
        $region31: #{tpu_custom_call.1} parent=11 // pred_region
          _
        $region32: #{tpu_custom_call.1} parent=11 // pred_fallthru
          _
        // Predicated region
        $region33: #{tpu_custom_call.1} parent=11 // pred_check
          %p272 = pneg %p214
        $region34: #{tpu_custom_call.1} parent=11 // pred_check_branch
          %274 = sbr.rel (%p272) target = $region36
        $region35: #{tpu_custom_call.1} parent=11 // pred_region
          _
        $region36: #{tpu_custom_call.1} parent=11 // pred_fallthru
          _
      $region12: #{tpu_custom_call.1} parent=5 // pred_fallthru
        _
      %p275 = scmp.lt.s32.totalorder %s20, 2
      // Predicated region
      $region37: #{tpu_custom_call.1} parent=5 // pred_check
        %p276 = pneg %p275
      $region38: #{tpu_custom_call.1} parent=5 // pred_check_branch
        %278 = sbr.rel (%p276) target = $region40
      $region39: #{tpu_custom_call.1} parent=5 // pred_region
        // Predicated region
        $region41: #{tpu_custom_call.1} parent=39 // pred_check
          %p279 = pneg %p54
        $region42: #{tpu_custom_call.1} parent=39 // pred_check_branch
          %281 = sbr.rel (%p279) target = $region44
        $region43: #{tpu_custom_call.1} parent=39 // pred_region
          %s282 = smul.u32 2, %s28
          %p283 = scmp.lt.s32.totalorder %s27, 1
          %s284 = scalar_select %p283, %s27, 1
          %p285 = scmp.lt.s32.totalorder %s282, 1
          %s286 = scalar_select %p285, %s282, 1
          %s287 = smul.addr %s284, 2
          %s288 = sadd.s32 %s286, %s287
          %s289 = smul.addr %s288, 4
          %s290 = scalar_lea.vmem %s0, %s289
          %s291 = smul.u32 2, %s28
        $region44: #{tpu_custom_call.1} parent=39 // pred_fallthru
          _
        // Predicated region
        $region45: #{tpu_custom_call.1} parent=39 // pred_check
          %p292 = pneg %p82
        $region46: #{tpu_custom_call.1} parent=39 // pred_check_branch
          %294 = sbr.rel (%p292) target = $region48
        $region47: #{tpu_custom_call.1} parent=39 // pred_region
          %s295 = sand.u32 %s72, 1
          %s296 = scalar_lea.sflag [#allocation3], %s295
          %s297 = sand.u32 %s72, 1
          %s298 = smul.addr %s297, 8
          %s299 = scalar_lea.vmem [#allocation2], %s298
          %s300 = smul.u32 2, %s28
          %302 = vsyncadd %s296, 0
          %s303 = smul.addr %s27, 2
          %s304 = sadd.s32 %s300, %s303
          %s305 = smul.addr %s304, 4
          %s306 = scalar_lea.hbm %s1, %s305
          %s308 = sshll.u32 %s306, 4
          %s309 = int_to_ptr.hbm [resolvable:$true] %s308
          %s310 = sshll.u32 %s299, 4
          %s311 = int_to_ptr.vmem [resolvable:$true] %s310
          %313 = dma.hbm_to_vmem [thread:$0]  %s309, 128, %s311, %s296
        $region48: #{tpu_custom_call.1} parent=39 // pred_fallthru
          _
      $region40: #{tpu_custom_call.1} parent=5 // pred_fallthru
        _
      %p314 = scmp.le.s32.totalorder 1, %s20
      %p315 = scmp.lt.s32.totalorder %s20, 3
      %p316 = pnand %p314, %p315
      %p317 = pneg %p316
      // Predicated region
      $region49: #{tpu_custom_call.1} parent=5 // pred_check
        _
      $region50: #{tpu_custom_call.1} parent=5 // pred_check_branch
        %319 = sbr.rel (%p316) target = $region52
      $region51: #{tpu_custom_call.1} parent=5 // pred_region
        %s320 = ssub.s32 %s20, 1
        %s321 = sand.u32 %s75, 1
        %s322 = scalar_lea.sflag [#allocation3], %s321
        %s323 = sand.u32 %s75, 1
        %s324 = smul.addr %s323, 8
        %s325 = scalar_lea.vmem [#allocation2], %s324
        // Predicated region
        $region53: #{tpu_custom_call.1} parent=51 // pred_check
          %p326 = pneg %p88
        $region54: #{tpu_custom_call.1} parent=51 // pred_check_branch
          %328 = sbr.rel (%p326) target = $region56
        $region55: #{tpu_custom_call.1} parent=51 // pred_region
          %330 = dma.done %s322, 128
        $region56: #{tpu_custom_call.1} parent=51 // pred_fallthru
          _
        %s331 = smul.u32 2, %s30
        %p332 = scmp.lt.s32.totalorder %s29, 1
        %s333 = scalar_select %p332, %s29, 1
        %p334 = scmp.lt.s32.totalorder %s331, 1
        %s335 = scalar_select %p334, %s331, 1
        %s336 = smul.addr %s333, 2
        %s337 = sadd.s32 %s335, %s336
        %s338 = smul.addr %s337, 4
        %s339 = scalar_lea.vmem %s0, %s338
        %p340 = pneg %p60
        %p341 = pneg %p57
        %s342 = sand.u32 %s75, 1
        %s343 = scalar_lea.sflag [#allocation3], %s342
        %s344 = sand.u32 %s75, 1
        %s345 = smul.addr %s344, 8
        %s346 = scalar_lea.vmem [#allocation2], %s345
        %p347 = pneg %p88
        %p348 = pneg %p85
        %p349 = pneg %p109
        %p350 = pneg %p106
        %p351 = pneg %p130
        %p352 = pneg %p127
        %p353 = pneg %p151
        %p354 = pneg %p148
        %p355 = pneg %p172
        %p356 = pneg %p169
        %p357 = pneg %p193
        %p358 = pneg %p190
        %p359 = pneg %p214
        %p360 = pneg %p211
        %p361 = pneg %p242
        %p362 = pneg %p239
        %s363 = sand.u32 %s229, 1
        %s364 = scalar_lea.sflag [#allocation4], %s363
        %s365 = sand.u32 %s229, 1
        %s366 = smul.addr %s365, 8
        %s367 = scalar_lea.vmem [#allocation5], %s366
        %s368 = smul.u32 2, %s30
        %p369 = scmp.lt.s32.totalorder %s29, 1
        %s370 = scalar_select %p369, %s29, 1
        %p371 = scmp.lt.s32.totalorder %s368, 1
        %s372 = scalar_select %p371, %s368, 1
        %s373 = smul.addr %s370, 2
        %s374 = sadd.s32 %s372, %s373
        %s375 = smul.addr %s374, 4
        %s376 = scalar_lea.vmem %s0, %s375
        %s377 = smul.u32 2, %s30
        %s378 = smul.u32 2, %s30
        %s379 = smul.u32 2, %s30
        %v380 = vld [vmem:[%s325] sm:$0xff]
        %v381 = vld [vmem:[%s376] sm:$0xff]
        %v382 = vld [vmem:[%s2] sm:$0xff]
        %v383 = vld [vmem:[%s3] sm:$0xff]
        %385 = vset.pattern.permute.xlu0 0
        %386 = vperm.xlu0 %385, %v383
        %v387 = vpop.permute.xlu0 %386
        %390 = vst [vmem:[#allocation1] ss:$2 sm:$0xff] %v380
        %v391 = vld.sshfl [vmem:[#allocation1] sm:$0xff pattern:$0x75316420]
        %v392 = vld.sshfl [vmem:[#allocation1 + $0x8] sm:$0xff pattern:$0x75316420]
        %vm393 = vcmask 31744
        %v395 = vsel %vm393, %v382, 0
        %vm397 = vcmask 1043456
        %v398 = vsel %vm397, %v391, 0
        %v400 = vsel %vm397, %v392, 0
        %402 = vmatpush.msra.mxu0 0.0
        %403 = vmatpush.msra.mxu0 0.0
        %404 = vmatpush.msra.mxu0 0.0
        %405 = vmatpush.msra.mxu0 0.0
        %406 = vmatpush.msra.mxu0 0.0
        %407 = vmatpush.msra.mxu0 0.0
        %408 = vmatpush.msra.mxu0 0.0
        %409 = vmatpush.msra.mxu0 0.0
        %410 = vmatpush.msra.mxu0 0.0
        %411 = vmatpush.msra.mxu0 0.0
        %412 = vmatpush.msra.mxu0 0.0
        %413 = vmatpush.msra.mxu0 0.0
        %414 = vmatpush.msra.mxu0 0.0
        %415 = vmatpush.msra.mxu0 0.0
        %416 = vmatpush.msra.mxu0 0.0
        %417 = vmatpush.msra.mxu0 %v398
        %418 = vmatmul.f32.gmra.mxu0 %v395
        %v419 = vpop.f32.mrf.mxu0
        %v420 = vadd.f32 %v387, %v419
        %421 = vdwg.mxu0
        %422 = vmatpush.msra.mxu0 0.0
        %423 = vmatpush.msra.mxu0 0.0
        %424 = vmatpush.msra.mxu0 0.0
        %425 = vmatpush.msra.mxu0 0.0
        %426 = vmatpush.msra.mxu0 0.0
        %427 = vmatpush.msra.mxu0 0.0
        %428 = vmatpush.msra.mxu0 0.0
        %429 = vmatpush.msra.mxu0 0.0
        %430 = vmatpush.msra.mxu0 0.0
        %431 = vmatpush.msra.mxu0 0.0
        %432 = vmatpush.msra.mxu0 0.0
        %433 = vmatpush.msra.mxu0 0.0
        %434 = vmatpush.msra.mxu0 0.0
        %435 = vmatpush.msra.mxu0 0.0
        %436 = vmatpush.msra.mxu0 0.0
        %437 = vmatpush.msra.mxu0 %v400
        %438 = vmatmul.f32.gmra.mxu0 %v395
        %v439 = vpop.f32.mrf.mxu0
        %v440 = vadd.f32 %v387, %v439
        %441 = vdwg.mxu0
        %v442 = vmax.f32 %v420, 0.0
        %v443 = vmax.f32 %v440, 0.0
        %v444 = vld [vmem:[%s4] sm:$0xf]
        %v445 = vld [vmem:[%s5] sm:$0xf]
        %447 = vset.pattern.permute.xlu0 0
        %448 = vperm.xlu0 %447, %v445
        %v449 = vpop.permute.xlu0 %448
        %vm451 = vcmask 64512
        %v453 = vsel %vm451, %v444, 0
        %455 = vmatpush.msra.mxu0 0.0
        %456 = vmatpush.msra.mxu0 0.0
        %457 = vmatpush.msra.mxu0 0.0
        %458 = vmatpush.msra.mxu0 0.0
        %459 = vmatpush.msra.mxu0 0.0
        %460 = vmatpush.msra.mxu0 0.0
        %461 = vmatpush.msra.mxu0 0.0
        %462 = vmatpush.msra.mxu0 0.0
        %463 = vmatpush.msra.mxu0 0.0
        %464 = vmatpush.msra.mxu0 0.0
        %465 = vmatpush.msra.mxu0 0.0
        %466 = vmatpush.msra.mxu0 0.0
        %467 = vmatpush.msra.mxu0 0.0
        %468 = vmatpush.msra.mxu0 0.0
        %469 = vmatpush.msra.mxu0 0.0
        %470 = vmatpush.msra.mxu0 %v442
        %471 = vmatmul.f32.gmra.mxu0 %v453
        %v472 = vpop.f32.mrf.mxu0
        %v473 = vadd.f32 %v449, %v472
        %474 = vdwg.mxu0
        %475 = vmatpush.msra.mxu0 0.0
        %476 = vmatpush.msra.mxu0 0.0
        %477 = vmatpush.msra.mxu0 0.0
        %478 = vmatpush.msra.mxu0 0.0
        %479 = vmatpush.msra.mxu0 0.0
        %480 = vmatpush.msra.mxu0 0.0
        %481 = vmatpush.msra.mxu0 0.0
        %482 = vmatpush.msra.mxu0 0.0
        %483 = vmatpush.msra.mxu0 0.0
        %484 = vmatpush.msra.mxu0 0.0
        %485 = vmatpush.msra.mxu0 0.0
        %486 = vmatpush.msra.mxu0 0.0
        %487 = vmatpush.msra.mxu0 0.0
        %488 = vmatpush.msra.mxu0 0.0
        %489 = vmatpush.msra.mxu0 0.0
        %490 = vmatpush.msra.mxu0 %v443
        %491 = vmatmul.f32.gmra.mxu0 %v453
        %v492 = vpop.f32.mrf.mxu0
        %v493 = vadd.f32 %v449, %v492
        %494 = vdwg.mxu0
        %v495 = vld [vmem:[%s6] sm:$0xf]
        %v496 = vld [vmem:[%s7] sm:$0xf]
        %498 = vset.pattern.permute.xlu0 0
        %499 = vperm.xlu0 %498, %v496
        %v500 = vpop.permute.xlu0 %499
        %v503 = vsel %vm451, %v495, 0
        %505 = vmatpush.msra.mxu0 0.0
        %506 = vmatpush.msra.mxu0 0.0
        %507 = vmatpush.msra.mxu0 0.0
        %508 = vmatpush.msra.mxu0 0.0
        %509 = vmatpush.msra.mxu0 0.0
        %510 = vmatpush.msra.mxu0 0.0
        %511 = vmatpush.msra.mxu0 0.0
        %512 = vmatpush.msra.mxu0 0.0
        %513 = vmatpush.msra.mxu0 0.0
        %514 = vmatpush.msra.mxu0 0.0
        %515 = vmatpush.msra.mxu0 0.0
        %516 = vmatpush.msra.mxu0 0.0
        %517 = vmatpush.msra.mxu0 0.0
        %518 = vmatpush.msra.mxu0 0.0
        %519 = vmatpush.msra.mxu0 0.0
        %520 = vmatpush.msra.mxu0 %v442
        %521 = vmatmul.f32.gmra.mxu0 %v503
        %v522 = vpop.f32.mrf.mxu0
        %v523 = vadd.f32 %v500, %v522
        %524 = vdwg.mxu0
        %525 = vmatpush.msra.mxu0 0.0
        %526 = vmatpush.msra.mxu0 0.0
        %527 = vmatpush.msra.mxu0 0.0
        %528 = vmatpush.msra.mxu0 0.0
        %529 = vmatpush.msra.mxu0 0.0
        %530 = vmatpush.msra.mxu0 0.0
        %531 = vmatpush.msra.mxu0 0.0
        %532 = vmatpush.msra.mxu0 0.0
        %533 = vmatpush.msra.mxu0 0.0
        %534 = vmatpush.msra.mxu0 0.0
        %535 = vmatpush.msra.mxu0 0.0
        %536 = vmatpush.msra.mxu0 0.0
        %537 = vmatpush.msra.mxu0 0.0
        %538 = vmatpush.msra.mxu0 0.0
        %539 = vmatpush.msra.mxu0 0.0
        %540 = vmatpush.msra.mxu0 %v443
        %541 = vmatmul.f32.gmra.mxu0 %v503
        %v542 = vpop.f32.mrf.mxu0
        %v543 = vadd.f32 %v500, %v542
        %544 = vdwg.mxu0
        %v547 = vrot.slane %v493, 4
        %v548 = vsel %vm397, %v473, %v547
        %v550 = vmul.f32 %v381, %v548
        %v553 = vrot.slane %v543, 4
        %v554 = vsel %vm397, %v523, %v553
        %v556 = vadd.f32 %v550, %v554
        %557 = vst [vmem:[%s367] sm:$0xff] %v556
        %s558 = sand.u32 %s229, 1
        %s559 = scalar_lea.sflag [#allocation4], %s558
        %s560 = sand.u32 %s229, 1
        %s561 = smul.addr %s560, 8
        %s562 = scalar_lea.vmem [#allocation5], %s561
        // Predicated region
        $region57: #{tpu_custom_call.1} parent=51 // pred_check
          %p563 = pneg %p239
        $region58: #{tpu_custom_call.1} parent=51 // pred_check_branch
          %565 = sbr.rel (%p563) target = $region60
        $region59: #{tpu_custom_call.1} parent=51 // pred_region
          %s566 = smul.u32 2, %s30
          %568 = vsyncadd %s559, 0
          %s569 = smul.addr %s29, 2
          %s570 = sadd.s32 %s566, %s569
          %s571 = smul.addr %s570, 4
          %s572 = scalar_lea.hbm %s8, %s571
          %s574 = sshll.u32 %s562, 4
          %s575 = int_to_ptr.vmem [resolvable:$true] %s574
          %s576 = sshll.u32 %s572, 4
          %s577 = int_to_ptr.hbm [resolvable:$true] %s576
          %579 = dma.vmem_to_hbm [thread:$0]  %s575, 128, %s577, %s559
        $region60: #{tpu_custom_call.1} parent=51 // pred_fallthru
          _
      $region52: #{tpu_custom_call.1} parent=5 // pred_fallthru
        _
      %p580 = scmp.le.s32.totalorder 2, %s20
      // Predicated region
      $region61: #{tpu_custom_call.1} parent=5 // pred_check
        %p581 = pneg %p580
      $region62: #{tpu_custom_call.1} parent=5 // pred_check_branch
        %583 = sbr.rel (%p581) target = $region64
      $region63: #{tpu_custom_call.1} parent=5 // pred_region
        %s584 = ssub.s32 %s20, 2
        // Predicated region
        $region65: #{tpu_custom_call.1} parent=63 // pred_check
          %p585 = pneg %p245
        $region66: #{tpu_custom_call.1} parent=63 // pred_check_branch
          %587 = sbr.rel (%p585) target = $region68
        $region67: #{tpu_custom_call.1} parent=63 // pred_region
          %s588 = sand.u32 %s230, 1
          %s589 = scalar_lea.sflag [#allocation4], %s588
          %s590 = sand.u32 %s230, 1
          %s591 = smul.addr %s590, 8
          %s592 = scalar_lea.vmem [#allocation5], %s591
          %594 = dma.done %s589, 128
        $region68: #{tpu_custom_call.1} parent=63 // pred_fallthru
          _
      $region64: #{tpu_custom_call.1} parent=5 // pred_fallthru
        _
    $region6: #{tpu_custom_call.1} parent=1 // loop_footer
      %s24 = sadd.s32 1, %s20
    $region7: #{tpu_custom_call.1} parent=1 // loop_footer_branch
      %19 = sbr.rel target = $region3
    $region8: #{tpu_custom_call.1} parent=1 // loop_exit
      _
    %595 = vsyncpa [#allocation3], 1
    %s596 = scalar_lea.sflag [#allocation3], 1
    %597 = vsyncpa %s596, 1
    %598 = vsyncpa [#allocation4], 1
    %s599 = scalar_lea.sflag [#allocation4], 1
    %600 = vsyncpa %s599, 1

</llo_original>
